<compile_context>
chip_gen: v7x
topology: tpu7x:2x2x1
jax: 0.10.0
libtpu: 0.0.40
codegen_flags: <defaults>
</compile_context>

<pallas_src>
import functools

import jax
import jax.numpy as jnp
from jax.experimental import pallas as pl
from jax.experimental.pallas import tpu as pltpu


def _round_up(x, m):
    return ((x + m - 1) // m) * m


def _cdiv(a, b):
    return (a + b - 1) // b


def _sublane_multiple(dtype):
    # f32 -> 8, bf16 -> 16, int8/fp8 -> 32 (sub-32-bit packs along sublanes).
    return max(8, 32 // jnp.dtype(dtype).itemsize)


def _default_vmem_limit_bytes():
    """~3/4 of physical VMEM: ≈48 MiB on v7x (64 MiB), ≈96 MiB on v5e/v6e."""
    phys = None
    try:
        phys = pltpu.get_tpu_info().vmem_capacity_bytes
    except Exception:
        phys = None
    if not phys or phys <= 0:
        try:
            kind = jax.devices()[0].device_kind.lower()
            phys = 64 * 1024 * 1024 if "v7" in kind else 128 * 1024 * 1024
        except Exception:
            phys = 64 * 1024 * 1024
    return int(phys * 3 // 4)


def _lane_tile_align():
    """MXU column width: 128 on v5e and older, 256 on v6e/v7x."""
    try:
        kind = jax.devices()[0].device_kind.lower()
    except Exception:
        return 128
    for old in ("v2", "v3", "v4", "v5"):
        if old in kind:
            return 128
    return 256


def _mlp_kernel_single(x_ref, w1_ref, b1_ref, w2_ref, b2_ref, o_ref):
    """Fused Linear -> ReLU -> Linear; all output columns in one block."""
    h = jnp.dot(x_ref[...], w1_ref[...], preferred_element_type=jnp.float32)
    h = jnp.maximum(h + b1_ref[...].astype(jnp.float32), 0.0)
    y = jnp.dot(h.astype(w2_ref.dtype), w2_ref[...],
                preferred_element_type=jnp.float32)
    o_ref[...] = (y + b2_ref[...].astype(jnp.float32)).astype(o_ref.dtype)


def _mlp_kernel_coltiled(x_ref, w1_ref, b1_ref, w2_ref, b2_ref, o_ref, h_ref):
    """Column-tiled variant: Linear1 runs once per batch tile (j == 0) into a
    VMEM scratch and is reused for every output-column block."""
    @pl.when(pl.program_id(1) == 0)
    def _():
        h = jnp.dot(x_ref[...], w1_ref[...],
                    preferred_element_type=jnp.float32)
        h = jnp.maximum(h + b1_ref[...].astype(jnp.float32), 0.0)
        h_ref[...] = h.astype(h_ref.dtype)

    y = jnp.dot(h_ref[...], w2_ref[...], preferred_element_type=jnp.float32)
    o_ref[...] = (y + b2_ref[...].astype(jnp.float32)).astype(o_ref.dtype)


@functools.partial(
    jax.jit,
    static_argnames=("block_b", "block_n", "vmem_limit_bytes",
                     "cast_to_bf16", "apply_bn"))
def net_less_project_forward(x, w1, b1, w2, b2, *, block_b=None, block_n=None,
                             vmem_limit_bytes=None, cast_to_bf16=False,
                             apply_bn=False):
    """x: (B, D); w1: (D, D); b1: (1, D); w2: (D, O); b2: (1, O).

    Weights are pre-transposed to (in_features, out_features) so the kernel
    computes plain `x @ W` on the MXU with no in-kernel transpose.
    With cast_to_bf16=True, x/W1/W2 are cast to bf16 once in the wrapper
    (full MXU rate, f32 accumulation) — slightly different rounding than a
    pure-f32 PyTorch reference.
    """
    if apply_bn:
        # TODO(synk): BatchNorm1d between the linears is not kernelized.
        raise NotImplementedError("apply_bn=True path is not implemented")

    out_dtype = x.dtype
    if cast_to_bf16:
        x = x.astype(jnp.bfloat16)
        w1 = w1.astype(jnp.bfloat16)
        w2 = w2.astype(jnp.bfloat16)

    B, D = x.shape
    O = w2.shape[1]

    itemsize_x = jnp.dtype(x.dtype).itemsize
    itemsize_w1 = jnp.dtype(w1.dtype).itemsize
    itemsize_w2 = jnp.dtype(w2.dtype).itemsize
    itemsize_o = jnp.dtype(out_dtype).itemsize
    sub = _sublane_multiple(x.dtype)
    lane_align = _lane_tile_align()

    if vmem_limit_bytes is None:
        vmem_limit_bytes = _default_vmem_limit_bytes()

    headroom = 2 * 1024 * 1024  # compiler internal scratch, semaphores, ...
    budget = vmem_limit_bytes - headroom

    # Resident Linear1 operands (single-buffered): W1 + b1.
    w1_bytes = (D * D + D) * itemsize_w1
    rem = max(budget - w1_bytes, 0)

    # Per-batch-row VMEM cost independent of block_n:
    #   x tile (x2 buffers) + h (w2 dtype, scratch or temp) + f32 h temporary.
    row_cost = D * (2 * itemsize_x + itemsize_w2 + 4)

    # ---- batch (M) tiling ----------------------------------------------------
    if block_b is None:
        if B <= 512:
            block_b = _round_up(B, sub)
        else:
            # >= 2 row blocks so a 'parallel' axis can feed both v7x cores,
            # while keeping ~512 rows per tile to fill the MXU M dimension.
            block_b = _round_up(_cdiv(B, _cdiv(B, 512)), sub)
        if rem > 0 and row_cost > 0:
            # Batch-dependent buffers take at most ~2/3 of the VMEM left after
            # W1; the rest is reserved for W2 / the output tile.
            max_rows = max(sub, ((rem * 2 // 3) // row_cost) // sub * sub)
            block_b = min(block_b, max_rows)
    block_b = max(sub, _round_up(block_b, sub))
    block_b = min(block_b, _round_up(B, sub))
    B_pad = _round_up(B, block_b)

    # ---- output (N) tiling: lane-dense, MXU-width aligned --------------------
    O_pad = _round_up(O, 128)
    n_align = lane_align if O_pad % lane_align == 0 else 128

    if block_n is None:
        rem_n = rem - block_b * row_cost
        # Single resident column block: W2 + b2 single-buffered, output tile
        # double-buffered, plus the f32 result temporary.
        single_cost = ((D + 1) * O_pad * itemsize_w2
                       + block_b * O_pad * (2 * itemsize_o + 4))
        if single_cost <= rem_n:
            block_n = O_pad
        else:
            # Column-tiled: W2/b2 and the output block are double-buffered.
            per_col = 2 * (D + 1) * itemsize_w2 + block_b * (2 * itemsize_o + 4)
            max_cols = max(n_align, max(rem_n, 0) // max(per_col, 1))
            n_blocks = _cdiv(O_pad, max_cols)
            block_n = _round_up(_cdiv(O_pad, n_blocks), n_align)
    block_n = _round_up(min(block_n, O_pad), 128)
    n_col_blocks = _cdiv(O_pad, block_n)
    O_pad = block_n * n_col_blocks

    # ---- pad operands only when needed (result sliced back if padded) -------
    x_p = x if B_pad == B else jnp.pad(x, ((0, B_pad - B), (0, 0)))
    if O_pad == O:
        w2_p, b2_p = w2, b2
    else:
        w2_p = jnp.pad(w2, ((0, 0), (0, O_pad - O)))
        b2_p = jnp.pad(b2, ((0, 0), (0, O_pad - O)))

    grid = (B_pad // block_b, n_col_blocks)

    # Grid-invariant operands only need a single VMEM buffer (no revisit DMA).
    resident = dict(pipeline_mode=pl.Buffered(1))
    if n_col_blocks == 1:
        kernel = _mlp_kernel_single
        scratch_shapes = []
        w2_mode = resident
        dim_sem = ("parallel", "parallel")
    else:
        kernel = _mlp_kernel_coltiled
        scratch_shapes = [pltpu.VMEM((block_b, D), w2.dtype)]
        w2_mode = {}
        dim_sem = ("parallel", "arbitrary")   # h scratch carried across j

    out = pl.pallas_call(
        kernel,
        out_shape=jax.ShapeDtypeStruct((B_pad, O_pad), out_dtype),
        grid_spec=pltpu.PrefetchScalarGridSpec(
            num_scalar_prefetch=0,
            grid=grid,
            in_specs=[
                pl.BlockSpec((block_b, D), lambda i, j: (i, 0)),             # x
                pl.BlockSpec((D, D), lambda i, j: (0, 0), **resident),       # W1
                pl.BlockSpec((1, D), lambda i, j: (0, 0), **resident),       # b1
                pl.BlockSpec((D, block_n), lambda i, j: (0, j), **w2_mode),  # W2
                pl.BlockSpec((1, block_n), lambda i, j: (0, j), **w2_mode),  # b2
            ],
            out_specs=pl.BlockSpec((block_b, block_n), lambda i, j: (i, j)),
            scratch_shapes=scratch_shapes,
        ),
        compiler_params=pltpu.CompilerParams(
            dimension_semantics=dim_sem,
            vmem_limit_bytes=vmem_limit_bytes),
    )(x_p, w1, b1, w2_p, b2_p)

    if B_pad == B and O_pad == O:
        return out
    return out[:B, :O]


def init_params(key, input_dim, out_dim):
    """PyTorch nn.Linear default init (U[-1/sqrt(fan_in), 1/sqrt(fan_in)]).
    Weights returned already transposed to (in_features, out_features);
    biases as (1, out_features)."""
    k1, k2, k3, k4 = jax.random.split(key, 4)
    bound = 1.0 / (input_dim ** 0.5)
    w1 = jax.random.uniform(k1, (input_dim, input_dim), jnp.float32,
                            -bound, bound)
    b1 = jax.random.uniform(k2, (1, input_dim), jnp.float32, -bound, bound)
    w2 = jax.random.uniform(k3, (input_dim, out_dim), jnp.float32,
                            -bound, bound)
    b2 = jax.random.uniform(k4, (1, out_dim), jnp.float32, -bound, bound)
    return w1, b1, w2, b2


def reference_forward(x, w1, b1, w2, b2):
    h = jnp.maximum(x @ w1 + b1, 0.0)
    return h @ w2 + b2


if __name__ == "__main__":
    key = jax.random.PRNGKey(0)
    kx, kp = jax.random.split(key)

    # Module defaults: projector MLP D -> D -> out_dim=128.
    batch, input_dim, out_dim = 8, 32, 128
    x = jax.random.normal(kx, (batch, input_dim), jnp.float32)
    w1, b1, w2, b2 = init_params(kp, input_dim, out_dim)

    y = jax.block_until_ready(net_less_project_forward(x, w1, b1, w2, b2))
    y_ref = reference_forward(x, w1, b1, w2, b2)
    assert y.shape == (batch, out_dim)
    assert jnp.allclose(y, y_ref, atol=1e-4, rtol=1e-4), "mismatch vs reference"

    # Column-tiled path (h computed once per batch tile, reused across j)
    # plus a ragged batch that exercises padding / slicing.
    kx2, kp2 = jax.random.split(jax.random.PRNGKey(1))
    B2, D2, O2 = 37, 128, 512
    x2 = jax.random.normal(kx2, (B2, D2), jnp.float32)
    p2 = init_params(kp2, D2, O2)
    y2 = jax.block_until_ready(net_less_project_forward(x2, *p2, block_n=128))
    y2_ref = reference_forward(x2, *p2)
    assert y2.shape == (B2, O2)
    assert jnp.allclose(y2, y2_ref, atol=1e-3, rtol=1e-3), "col-tiled mismatch"

    # bf16 fast path (operands pre-cast once; f32 accumulation on the MXU).
    y3 = jax.block_until_ready(
        net_less_project_forward(x, w1, b1, w2, b2, cast_to_bf16=True))
    assert y3.shape == (batch, out_dim)
    assert bool(jnp.all(jnp.isfinite(y3)))

    print("KERNEL_OK")
</pallas_src>

<mosaic_0001>
module attributes {stable_mosaic.version = 11 : i64} {
  func.func @_mlp_kernel_single(%arg0: i32, %arg1: i32, %arg2: memref<8x32xf32, #tpu.memory_space<vmem>>, %arg3: memref<32x32xf32, #tpu.memory_space<vmem>>, %arg4: memref<1x32xf32, #tpu.memory_space<vmem>>, %arg5: memref<32x128xf32, #tpu.memory_space<vmem>>, %arg6: memref<1x128xf32, #tpu.memory_space<vmem>>, %arg7: memref<8x128xf32, #tpu.memory_space<vmem>>) attributes {dimension_semantics = [#tpu.dimension_semantics<parallel>, #tpu.dimension_semantics<parallel>], iteration_bounds = array<i64: 1, 1>, scalar_prefetch = 0 : i64, scratch_operands = 0 : i64, tpu.core_type = #tpu.core_type<tc>, window_params = [{transform_indices = @transform_0, window_bounds = array<i64: 8, 32>}, {pipeline_mode = #tpu.pipeline_mode<synchronous>, transform_indices = @transform_1, window_bounds = array<i64: 32, 32>}, {pipeline_mode = #tpu.pipeline_mode<synchronous>, transform_indices = @transform_2, window_bounds = array<i64: 1, 32>}, {pipeline_mode = #tpu.pipeline_mode<synchronous>, transform_indices = @transform_3, window_bounds = array<i64: 32, 128>}, {pipeline_mode = #tpu.pipeline_mode<synchronous>, transform_indices = @transform_4, window_bounds = array<i64: 1, 128>}, {transform_indices = @transform_5, window_bounds = array<i64: 8, 128>}]} {
    %c0 = arith.constant 0 : index
    %c0_0 = arith.constant 0 : index
    %0 = vector.load %arg2[%c0, %c0_0] : memref<8x32xf32, #tpu.memory_space<vmem>>, vector<8x32xf32>
    %c0_1 = arith.constant 0 : index
    %c0_2 = arith.constant 0 : index
    %1 = vector.load %arg3[%c0_1, %c0_2] : memref<32x32xf32, #tpu.memory_space<vmem>>, vector<32x32xf32>
    %cst = arith.constant dense<0.000000e+00> : vector<8x32xf32>
    %2 = tpu.matmul %0, %1, %cst {dimension_numbers = #tpu.dot_dimension_numbers<[1], [0], [0], [1], [0, 0, 1, 1], [], []>} : vector<8x32xf32>, vector<32x32xf32>, vector<8x32xf32> -> vector<8x32xf32>
    %c0_3 = arith.constant 0 : index
    %c0_4 = arith.constant 0 : index
    %3 = vector.load %arg4[%c0_3, %c0_4] : memref<1x32xf32, #tpu.memory_space<vmem>>, vector<1x32xf32>
    %4 = vector.broadcast %3 : vector<1x32xf32> to vector<8x32xf32>
    %5 = arith.addf %2, %4 : vector<8x32xf32>
    %cst_5 = arith.constant 0.000000e+00 : f32
    %6 = vector.broadcast %cst_5 : f32 to vector<8x32xf32>
    %7 = arith.maximumf %5, %6 : vector<8x32xf32>
    %c0_6 = arith.constant 0 : index
    %c0_7 = arith.constant 0 : index
    %8 = vector.load %arg5[%c0_6, %c0_7] : memref<32x128xf32, #tpu.memory_space<vmem>>, vector<32x128xf32>
    %cst_8 = arith.constant dense<0.000000e+00> : vector<8x128xf32>
    %9 = tpu.matmul %7, %8, %cst_8 {dimension_numbers = #tpu.dot_dimension_numbers<[1], [0], [0], [1], [0, 0, 1, 1], [], []>} : vector<8x32xf32>, vector<32x128xf32>, vector<8x128xf32> -> vector<8x128xf32>
    %c0_9 = arith.constant 0 : index
    %c0_10 = arith.constant 0 : index
    %10 = vector.load %arg6[%c0_9, %c0_10] : memref<1x128xf32, #tpu.memory_space<vmem>>, vector<1x128xf32>
    %11 = vector.broadcast %10 : vector<1x128xf32> to vector<8x128xf32>
    %12 = arith.addf %9, %11 : vector<8x128xf32>
    %c0_11 = arith.constant 0 : index
    %c0_12 = arith.constant 0 : index
    %13 = vector.load %arg7[%c0_11, %c0_12] : memref<8x128xf32, #tpu.memory_space<vmem>>, vector<8x128xf32>
    tpu.vector_store %arg7[%c0_11, %c0_12], %12 {strides = array<i32>} : memref<8x128xf32, #tpu.memory_space<vmem>>, vector<8x128xf32>,
    return
  }
  func.func @transform_0(%arg0: i32, %arg1: i32) -> (i32, i32) {
    %c0_i32 = arith.constant 0 : i32
    %c0_i32_0 = arith.constant 0 : i32
    return %arg0, %c0_i32 : i32, i32
  }
  func.func @transform_1(%arg0: i32, %arg1: i32) -> (i32, i32) {
    %c0_i32 = arith.constant 0 : i32
    %c0_i32_0 = arith.constant 0 : i32
    %c0_i32_1 = arith.constant 0 : i32
    return %c0_i32, %c0_i32_0 : i32, i32
  }
  func.func @transform_2(%arg0: i32, %arg1: i32) -> (i32, i32) {
    %c0_i32 = arith.constant 0 : i32
    %c0_i32_0 = arith.constant 0 : i32
    %c0_i32_1 = arith.constant 0 : i32
    return %c0_i32, %c0_i32_0 : i32, i32
  }
  func.func @transform_3(%arg0: i32, %arg1: i32) -> (i32, i32) {
    %c0_i32 = arith.constant 0 : i32
    %c0_i32_0 = arith.constant 0 : i32
    return %c0_i32, %arg1 : i32, i32
  }
  func.func @transform_4(%arg0: i32, %arg1: i32) -> (i32, i32) {
    %c0_i32 = arith.constant 0 : i32
    %c0_i32_0 = arith.constant 0 : i32
    return %c0_i32, %arg1 : i32, i32
  }
  func.func @transform_5(%arg0: i32, %arg1: i32) -> (i32, i32) {
    %c0_i32 = arith.constant 0 : i32
    return %arg0, %arg1 : i32, i32
  }
}

</mosaic_0001>

<llo_original>
// kernel: net_less_project_forward.1
$region0: #{net_less_project_forward.1}
  #allocation0 [shape = 'u32[]', space=smem, size = 0x4, offset = 0x4, fixed_abs, tag = 'smem constant byte address 0x4 - core index']
  #allocation1 [shape = 'u32[144,128]{1,0:T(1,128)}', space=vmem, size = 0x12000, scoped, tag = 'internal scratch']
  %s0 = inlined_call_operand.hbm [shape: f32[8,32], index: 0, kind: input, shape index: {}]
  %s1 = inlined_call_operand.hbm [shape: f32[32,32], index: 1, kind: input, shape index: {}]
  %s2 = inlined_call_operand.hbm [shape: f32[1,32], index: 2, kind: input, shape index: {}]
  %s3 = inlined_call_operand.hbm [shape: f32[32,128], index: 3, kind: input, shape index: {}]
  %s4 = inlined_call_operand.hbm [shape: f32[1,128], index: 4, kind: input, shape index: {}]
  %s5 = inlined_call_operand.hbm [shape: f32[8,128], index: 5, kind: output, shape index: {}]
  %s6 = sld [smem:[#allocation0]]
  $region50: #{net_less_project_forward.1} parent=0
    _
  %s8 = ssub.s32 1, %s6
  %s9 = scalar_select 0, %s8, %s6
  $region1: #{net_less_project_forward.1} parent=0
    #allocation2 [shape = 'u8[4096]{0}', space=vmem, size = 0x1000, scoped, tag = 'input window, operand 0, single buffered']
    #allocation3 [shape = 's32[1]{0}', space=sflag, size = 0x4, scoped, tag = 'scoped memory for net_less_project_forward.1']
    #allocation4 [shape = 's32[1]{0}', space=sflag, size = 0x4, scoped, tag = 'scoped memory for net_less_project_forward.1']
    #allocation5 [shape = 'u8[16384]{0}', space=vmem, size = 0x4000, scoped, tag = 'input window, operand 1, single buffered']
    #allocation6 [shape = 's32[1]{0}', space=sflag, size = 0x4, scoped, tag = 'scoped memory for net_less_project_forward.1']
    #allocation7 [shape = 'u8[512]{0}', space=vmem, size = 0x400, scoped, tag = 'input window, operand 2, single buffered']
    #allocation8 [shape = 'u8[16384]{0}', space=vmem, size = 0x4000, scoped, tag = 'input window, operand 3, single buffered']
    #allocation9 [shape = 's32[1]{0}', space=sflag, size = 0x4, scoped, tag = 'scoped memory for net_less_project_forward.1']
    #allocation10 [shape = 'u8[512]{0}', space=vmem, size = 0x400, scoped, tag = 'input window, operand 4, single buffered']
    #allocation11 [shape = 'u8[4096]{0}', space=vmem, size = 0x1000, scoped, tag = 'output window, operand 0, single buffered']
    %10 = vsyncpa [#allocation3], 0
    %11 = vsyncpa [#allocation6], 0
    %12 = vsyncpa [#allocation9], 0
    %13 = vsyncpa [#allocation4], 0
    // Predicated region
    $region2: #{net_less_project_forward.1} parent=1 // pred_check
      _
    $region3: #{net_less_project_forward.1} parent=1 // pred_check_branch
      %15 = sbr.rel (0) target = $region5
    $region4: #{net_less_project_forward.1} parent=1 // pred_region
      %s17 = ssub.s32 128, 128
      %18 = vsyncadd [#allocation3], %s17
      %s20 = sshll.u32 [#allocation2], 4
      %s21 = int_to_ptr.vmem [resolvable:$true] %s20
      %23 = dma.hbm_to_vmem [thread:$0]  %s0, 128, %s21, [#allocation3]
    $region5: #{net_less_project_forward.1} parent=1 // pred_fallthru
      _
    // Predicated region
    $region6: #{net_less_project_forward.1} parent=1 // pred_check
      _
    $region7: #{net_less_project_forward.1} parent=1 // pred_check_branch
      %25 = sbr.rel (0) target = $region9
    $region8: #{net_less_project_forward.1} parent=1 // pred_region
      %s27 = ssub.s32 512, 512
      %28 = vsyncadd [#allocation6], %s27
      %s29 = sshll.u32 [#allocation5], 4
      %s30 = int_to_ptr.vmem [resolvable:$true] %s29
      %35 = dma.hbm_to_vmem [thread:$0]  %s1, 512, %s30, [#allocation6], 128, 128, 8
    $region9: #{net_less_project_forward.1} parent=1 // pred_fallthru
      _
    // Predicated region
    $region10: #{net_less_project_forward.1} parent=1 // pred_check
      _
    $region11: #{net_less_project_forward.1} parent=1 // pred_check_branch
      %37 = sbr.rel (0) target = $region13
    $region12: #{net_less_project_forward.1} parent=1 // pred_region
      %s39 = ssub.s32 16, 16
      %40 = vsyncadd [#allocation6], %s39
      %s42 = sshll.u32 [#allocation7], 4
      %s43 = int_to_ptr.vmem [resolvable:$true] %s42
      %45 = dma.hbm_to_vmem [thread:$0]  %s2, 16, %s43, [#allocation6]
    $region13: #{net_less_project_forward.1} parent=1 // pred_fallthru
      _
    // Predicated region
    $region14: #{net_less_project_forward.1} parent=1 // pred_check
      _
    $region15: #{net_less_project_forward.1} parent=1 // pred_check_branch
      %47 = sbr.rel (0) target = $region17
    $region16: #{net_less_project_forward.1} parent=1 // pred_region
      %s49 = ssub.s32 512, 512
      %50 = vsyncadd [#allocation9], %s49
      %s51 = sshll.u32 [#allocation8], 4
      %s52 = int_to_ptr.vmem [resolvable:$true] %s51
      %57 = dma.hbm_to_vmem [thread:$0]  %s3, 512, %s52, [#allocation9], 128, 128, 8
    $region17: #{net_less_project_forward.1} parent=1 // pred_fallthru
      _
    // Predicated region
    $region18: #{net_less_project_forward.1} parent=1 // pred_check
      _
    $region19: #{net_less_project_forward.1} parent=1 // pred_check_branch
      %59 = sbr.rel (0) target = $region21
    $region20: #{net_less_project_forward.1} parent=1 // pred_region
      %s61 = ssub.s32 16, 16
      %62 = vsyncadd [#allocation9], %s61
      %s64 = sshll.u32 [#allocation10], 4
      %s65 = int_to_ptr.vmem [resolvable:$true] %s64
      %67 = dma.hbm_to_vmem [thread:$0]  %s4, 16, %s65, [#allocation9]
    $region21: #{net_less_project_forward.1} parent=1 // pred_fallthru
      _
    // Predicated region
    $region22: #{net_less_project_forward.1} parent=1 // pred_check
      _
    $region23: #{net_less_project_forward.1} parent=1 // pred_check_branch
      %69 = sbr.rel (0) target = $region25
    $region24: #{net_less_project_forward.1} parent=1 // pred_region
      %70 = dma.done [#allocation3], 128
    $region25: #{net_less_project_forward.1} parent=1 // pred_fallthru
      _
    // Predicated region
    $region26: #{net_less_project_forward.1} parent=1 // pred_check
      _
    $region27: #{net_less_project_forward.1} parent=1 // pred_check_branch
      %72 = sbr.rel (0) target = $region29
    $region28: #{net_less_project_forward.1} parent=1 // pred_region
      %73 = dma.done [#allocation6], 512
    $region29: #{net_less_project_forward.1} parent=1 // pred_fallthru
      _
    // Predicated region
    $region30: #{net_less_project_forward.1} parent=1 // pred_check
      _
    $region31: #{net_less_project_forward.1} parent=1 // pred_check_branch
      %75 = sbr.rel (0) target = $region33
    $region32: #{net_less_project_forward.1} parent=1 // pred_region
      %76 = dma.done [#allocation6], 16
    $region33: #{net_less_project_forward.1} parent=1 // pred_fallthru
      _
    // Predicated region
    $region34: #{net_less_project_forward.1} parent=1 // pred_check
      _
    $region35: #{net_less_project_forward.1} parent=1 // pred_check_branch
      %78 = sbr.rel (0) target = $region37
    $region36: #{net_less_project_forward.1} parent=1 // pred_region
      %79 = dma.done [#allocation9], 512
    $region37: #{net_less_project_forward.1} parent=1 // pred_fallthru
      _
    // Predicated region
    $region38: #{net_less_project_forward.1} parent=1 // pred_check
      _
    $region39: #{net_less_project_forward.1} parent=1 // pred_check_branch
      %81 = sbr.rel (0) target = $region41
    $region40: #{net_less_project_forward.1} parent=1 // pred_region
      %82 = dma.done [#allocation9], 16
    $region41: #{net_less_project_forward.1} parent=1 // pred_fallthru
      _
    %v83 = vld [vmem:[#allocation2] sm:$0xff]
    %v84 = vld [vmem:[#allocation5] sm:$0xff]
    %v85 = vld [vmem:[#allocation5 + $0x8] sm:$0xff]
    %v86 = vld [vmem:[#allocation5 + $0x10] sm:$0xff]
    %v87 = vld [vmem:[#allocation5 + $0x18] sm:$0xff]
    %v88 = vld [vmem:[#allocation7] sm:$0x1]
    %v90 = vlaneseq
    %v91 = vshrl.u32 %v90, 7
    %v92 = vsub.s32 0, %v91
    %v93 = vrot.slane %v88, %v92
    %vm95 = vcmask 261120
    %v97 = vsel %vm95, %v83, 0
    %99 = vmatprep.subr.mxu0 0.0
    %100 = vmatpush1.msra.mxu0 %v84
    %101 = vmatprep.subr.mxu0 0.0
    %102 = vmatpush1.msra.mxu0 %v85
    %103 = vmatprep.subr.mxu0 0.0
    %104 = vmatpush1.msra.mxu0 %v86
    %105 = vmatprep.subr.mxu0 0.0
    %106 = vmatpush1.msra.mxu0 %v87
    %107 = vmatprep.subr.mxu0 0.0
    %108 = vmatpush1.msra.mxu0 0.0
    %109 = vmatprep.subr.mxu0 0.0
    %110 = vmatpush1.msra.mxu0 0.0
    %111 = vmatprep.subr.mxu0 0.0
    %112 = vmatpush1.msra.mxu0 0.0
    %113 = vmatprep.subr.mxu0 0.0
    %114 = vmatpush1.msra.mxu0 0.0
    %115 = vmatprep.subr.mxu0 0.0
    %116 = vmatpush1.msra.mxu0 0.0
    %117 = vmatprep.subr.mxu0 0.0
    %118 = vmatpush1.msra.mxu0 0.0
    %119 = vmatprep.subr.mxu0 0.0
    %120 = vmatpush1.msra.mxu0 0.0
    %121 = vmatprep.subr.mxu0 0.0
    %122 = vmatpush1.msra.mxu0 0.0
    %123 = vmatprep.subr.mxu0 0.0
    %124 = vmatpush1.msra.mxu0 0.0
    %125 = vmatprep.subr.mxu0 0.0
    %126 = vmatpush1.msra.mxu0 0.0
    %127 = vmatprep.subr.mxu0 0.0
    %128 = vmatpush1.msra.mxu0 0.0
    %129 = vmatprep.subr.mxu0 0.0
    %130 = vmatpush1.msra.mxu0 0.0
    %131 = vmatprep.subr.mxu0 0.0
    %132 = vmatpush1.msra.mxu0 0.0
    %133 = vmatprep.subr.mxu0 0.0
    %134 = vmatpush1.msra.mxu0 0.0
    %135 = vmatprep.subr.mxu0 0.0
    %136 = vmatpush1.msra.mxu0 0.0
    %137 = vmatprep.subr.mxu0 0.0
    %138 = vmatpush1.msra.mxu0 0.0
    %139 = vmatprep.subr.mxu0 0.0
    %140 = vmatpush1.msra.mxu0 0.0
    %141 = vmatprep.subr.mxu0 0.0
    %142 = vmatpush1.msra.mxu0 0.0
    %143 = vmatprep.subr.mxu0 0.0
    %144 = vmatpush1.msra.mxu0 0.0
    %145 = vmatprep.subr.mxu0 0.0
    %146 = vmatpush1.msra.mxu0 0.0
    %147 = vmatprep.subr.mxu0 0.0
    %148 = vmatpush1.msra.mxu0 0.0
    %149 = vmatprep.subr.mxu0 0.0
    %150 = vmatpush1.msra.mxu0 0.0
    %151 = vmatprep.subr.mxu0 0.0
    %152 = vmatpush1.msra.mxu0 0.0
    %153 = vmatprep.subr.mxu0 0.0
    %154 = vmatpush1.msra.mxu0 0.0
    %155 = vmatprep.subr.mxu0 0.0
    %156 = vmatpush1.msra.mxu0 0.0
    %157 = vmatprep.subr.mxu0 0.0
    %158 = vmatpush1.msra.mxu0 0.0
    %159 = vmatprep.subr.mxu0 0.0
    %160 = vmatpush1.msra.mxu0 0.0
    %161 = vmatprep.subr.mxu0 0.0
    %162 = vmatpush1.msra.mxu0 0.0
    %163 = vmatprep.mubr.f32.mxu0 0.0
    %164 = vmatmul.mubr.f32.gmra.mrb[0].mxu0 %v97
    %v165 = vpop.f32.mrb[0].mxu0
    %v166 = vadd.f32 %v93, %v165
    %v167 = vpop.f32.mrb[0].mxu0
    %168 = vdwg.mxu0
    %v169 = vmax.f32 %v166, 0.0
    %v170 = vld [vmem:[#allocation8] sm:$0xff]
    %v171 = vld [vmem:[#allocation8 + $0x8] sm:$0xff]
    %v172 = vld [vmem:[#allocation8 + $0x10] sm:$0xff]
    %v173 = vld [vmem:[#allocation8 + $0x18] sm:$0xff]
    %v174 = vld [vmem:[#allocation10] sm:$0x1]
    %v176 = vlaneseq
    %v177 = vshrl.u32 %v176, 7
    %v178 = vsub.s32 0, %v177
    %v179 = vrot.slane %v174, %v178
    %v182 = vsel %vm95, %v169, 0
    %184 = vmatprep.subr.mxu0 0.0
    %185 = vmatpush1.msra.mxu0 %v170
    %186 = vmatprep.subr.mxu0 0.0
    %187 = vmatpush1.msra.mxu0 %v171
    %188 = vmatprep.subr.mxu0 0.0
    %189 = vmatpush1.msra.mxu0 %v172
    %190 = vmatprep.subr.mxu0 0.0
    %191 = vmatpush1.msra.mxu0 %v173
    %192 = vmatprep.subr.mxu0 0.0
    %193 = vmatpush1.msra.mxu0 0.0
    %194 = vmatprep.subr.mxu0 0.0
    %195 = vmatpush1.msra.mxu0 0.0
    %196 = vmatprep.subr.mxu0 0.0
    %197 = vmatpush1.msra.mxu0 0.0
    %198 = vmatprep.subr.mxu0 0.0
    %199 = vmatpush1.msra.mxu0 0.0
    %200 = vmatprep.subr.mxu0 0.0
    %201 = vmatpush1.msra.mxu0 0.0
    %202 = vmatprep.subr.mxu0 0.0
    %203 = vmatpush1.msra.mxu0 0.0
    %204 = vmatprep.subr.mxu0 0.0
    %205 = vmatpush1.msra.mxu0 0.0
    %206 = vmatprep.subr.mxu0 0.0
    %207 = vmatpush1.msra.mxu0 0.0
    %208 = vmatprep.subr.mxu0 0.0
    %209 = vmatpush1.msra.mxu0 0.0
    %210 = vmatprep.subr.mxu0 0.0
    %211 = vmatpush1.msra.mxu0 0.0
    %212 = vmatprep.subr.mxu0 0.0
    %213 = vmatpush1.msra.mxu0 0.0
    %214 = vmatprep.subr.mxu0 0.0
    %215 = vmatpush1.msra.mxu0 0.0
    %216 = vmatprep.subr.mxu0 0.0
    %217 = vmatpush1.msra.mxu0 0.0
    %218 = vmatprep.subr.mxu0 0.0
    %219 = vmatpush1.msra.mxu0 0.0
    %220 = vmatprep.subr.mxu0 0.0
    %221 = vmatpush1.msra.mxu0 0.0
    %222 = vmatprep.subr.mxu0 0.0
    %223 = vmatpush1.msra.mxu0 0.0
    %224 = vmatprep.subr.mxu0 0.0
    %225 = vmatpush1.msra.mxu0 0.0
    %226 = vmatprep.subr.mxu0 0.0
    %227 = vmatpush1.msra.mxu0 0.0
    %228 = vmatprep.subr.mxu0 0.0
    %229 = vmatpush1.msra.mxu0 0.0
    %230 = vmatprep.subr.mxu0 0.0
    %231 = vmatpush1.msra.mxu0 0.0
    %232 = vmatprep.subr.mxu0 0.0
    %233 = vmatpush1.msra.mxu0 0.0
    %234 = vmatprep.subr.mxu0 0.0
    %235 = vmatpush1.msra.mxu0 0.0
    %236 = vmatprep.subr.mxu0 0.0
    %237 = vmatpush1.msra.mxu0 0.0
    %238 = vmatprep.subr.mxu0 0.0
    %239 = vmatpush1.msra.mxu0 0.0
    %240 = vmatprep.subr.mxu0 0.0
    %241 = vmatpush1.msra.mxu0 0.0
    %242 = vmatprep.subr.mxu0 0.0
    %243 = vmatpush1.msra.mxu0 0.0
    %244 = vmatprep.subr.mxu0 0.0
    %245 = vmatpush1.msra.mxu0 0.0
    %246 = vmatprep.subr.mxu0 0.0
    %247 = vmatpush1.msra.mxu0 0.0
    %248 = vmatprep.mubr.f32.mxu0 0.0
    %249 = vmatmul.mubr.f32.gmra.mrb[0].mxu0 %v182
    %v250 = vpop.f32.mrb[0].mxu0
    %v251 = vadd.f32 %v179, %v250
    %v252 = vpop.f32.mrb[0].mxu0
    %253 = vdwg.mxu0
    %254 = vst [vmem:[#allocation11] sm:$0xff] %v251
    // Predicated region
    $region42: #{net_less_project_forward.1} parent=1 // pred_check
      _
    $region43: #{net_less_project_forward.1} parent=1 // pred_check_branch
      %256 = sbr.rel (0) target = $region45
    $region44: #{net_less_project_forward.1} parent=1 // pred_region
      %s258 = ssub.s32 128, 128
      %259 = vsyncadd [#allocation4], %s258
      %s261 = sshll.u32 [#allocation11], 4
      %s262 = int_to_ptr.vmem [resolvable:$true] %s261
      %264 = dma.vmem_to_hbm [thread:$0]  %s262, 128, %s5, [#allocation4]
    $region45: #{net_less_project_forward.1} parent=1 // pred_fallthru
      _
    // Predicated region
    $region46: #{net_less_project_forward.1} parent=1 // pred_check
      _
    $region47: #{net_less_project_forward.1} parent=1 // pred_check_branch
      %266 = sbr.rel (0) target = $region49
    $region48: #{net_less_project_forward.1} parent=1 // pred_region
      %267 = dma.done [#allocation4], 128
    $region49: #{net_less_project_forward.1} parent=1 // pred_fallthru
      _
    %268 = vsyncpa [#allocation3], 1
    %269 = vsyncpa [#allocation6], 1
    %270 = vsyncpa [#allocation9], 1
    %271 = vsyncpa [#allocation4], 1

</llo_original>
